<compile_context>
chip_gen: v7x
topology: tpu7x:2x2x1
jax: 0.10.0
libtpu: 0.0.40
codegen_flags: <defaults>
</compile_context>

<pallas_src>
import functools

import jax
import jax.numpy as jnp
from jax.experimental import pallas as pl
from jax.experimental.pallas import tpu as pltpu


def _layernorm_kernel(alpha_ref, beta_ref, x_ref, o_ref, *, eps: float,
                      hidden: int, normalize_in_f32: bool):
    # x_ref: (block_rows, hidden) tile in VMEM; alpha/beta: (1,) scalars in SMEM.
    x = x_ref[...]
    x32 = x.astype(jnp.float32)
    n = jnp.float32(hidden)

    # Single-pass row statistics: both reductions depend only on x (XLU can
    # overlap them); no full-tile (x - mean) pass before the variance.
    s1 = jnp.sum(x32, axis=-1, keepdims=True)
    s2 = jnp.sum(x32 * x32, axis=-1, keepdims=True)
    mean = s1 / n
    var = (s2 - n * mean * mean) / jnp.float32(hidden - 1)   # unbiased (torch.std)
    var = jnp.maximum(var, jnp.float32(0.0))                 # guard cancellation
    std = jnp.sqrt(var)
    inv = jax.lax.rsqrt(std + jnp.float32(eps))              # EUP slot

    # One per-row affine over the big tile:  y = x * scale + shift.
    scale = alpha_ref[0] * inv                               # (block_rows, 1)
    shift = beta_ref[0] - mean * scale                       # (block_rows, 1)
    if normalize_in_f32:
        y = x32 * scale + shift
    else:
        # bf16 VALU path (v6e/v7x): halves vreg pressure on the large tile.
        y = x * scale.astype(x.dtype) + shift.astype(x.dtype)
    o_ref[...] = y.astype(o_ref.dtype)


def _tpu_caps():
    """(vmem_capacity_bytes, num_tensorcores, is_v5) with safe fallbacks."""
    vmem_cap = 128 << 20
    kind = ""
    try:
        info = pltpu.get_tpu_info()
        vmem_cap = int(getattr(info, "vmem_capacity_bytes", vmem_cap))
    except Exception:
        pass
    try:
        kind = jax.devices()[0].device_kind.lower()
    except Exception:
        pass
    # v7x: 64 MiB VMEM per TensorCore, 2 TensorCores per chip.
    num_tc = 2 if (vmem_cap <= (64 << 20) or "v7" in kind) else 1
    is_v5 = "v5" in kind
    return vmem_cap, num_tc, is_v5


def _sublane_multiple(itemsize: int) -> int:
    return {4: 8, 2: 16, 1: 32}.get(itemsize, 8)


def _pick_block_rows(rows, hidden, itemsize, vmem_cap, num_tc, normalize_in_f32):
    """Largest sublane-aligned row tile that fits the generation-aware budget."""
    sub = _sublane_multiple(itemsize)
    if rows <= sub:
        return rows  # block == full dim is always legal
    # Budget: double-buffered input + output tiles (4x tile bytes) plus the
    # f32 intermediates (x32, x32*x32 / y), all within ~3/4 of physical VMEM.
    f32_factor = max(1, 4 // itemsize)
    n_f32_tmp = 3 if normalize_in_f32 else 2
    multiplier = 4 + n_f32_tmp * f32_factor
    budget = (vmem_cap * 3) // 4 - (4 << 20)
    target_tile_bytes = max(1 << 20, budget // multiplier)
    br = target_tile_bytes // max(1, hidden * itemsize)
    br = max(sub, (br // sub) * sub)
    br = min(br, max(sub, (rows // sub) * sub))  # a single full tile is fine
    if num_tc >= 2:
        # Balance the row grid across the 2 TensorCores: an even number of
        # near-equal steps instead of "one big block + tiny tail".
        n_steps = -(-rows // br)
        n_steps = max(2, ((n_steps + 1) // 2) * 2)
        br = -(-rows // n_steps)
        br = max(sub, ((br + sub - 1) // sub) * sub)
        br = min(br, max(sub, (rows // sub) * sub))
    return br


def _vmem_limit_bytes(block_rows, hidden, itemsize, vmem_cap, normalize_in_f32):
    tile_bytes = block_rows * hidden * itemsize
    f32_tile = block_rows * hidden * 4
    n_f32_tmp = 3 if normalize_in_f32 else 2
    needed = 4 * tile_bytes + n_f32_tmp * f32_tile + (4 << 20)
    cap = (vmem_cap * 3) // 4          # 96 MiB on v5e/v6e, 48 MiB on v7x
    return int(min(max(needed, 32 << 20), cap))


def layer_normilization(x, alpha, beta, *, epsilon: float = 1e-6,
                        block_rows: int | None = None):
    """x: (..., H).  alpha, beta: shape (1,) scalar parameters."""
    orig_shape = x.shape
    hidden = orig_shape[-1]
    assert hidden >= 2, "unbiased std needs at least 2 elements in the last dim"
    rows = 1
    for d in orig_shape[:-1]:
        rows *= d
    x2 = x.reshape(rows, hidden)

    itemsize = jnp.dtype(x.dtype).itemsize
    vmem_cap, num_tc, is_v5 = _tpu_caps()
    # Final normalize pass in bf16 only on chips with a bf16 VALU (v6e/v7x);
    # statistics always accumulate in f32.
    normalize_in_f32 = not (x.dtype == jnp.bfloat16 and not is_v5)

    if block_rows is None:
        block_rows = _pick_block_rows(rows, hidden, itemsize, vmem_cap, num_tc,
                                      normalize_in_f32)
    vmem_limit = _vmem_limit_bytes(block_rows, hidden, itemsize, vmem_cap,
                                   normalize_in_f32)

    grid = (pl.cdiv(rows, block_rows),)   # ragged tail tile handled by Pallas

    kernel = functools.partial(_layernorm_kernel, eps=epsilon, hidden=hidden,
                               normalize_in_f32=normalize_in_f32)

    # TODO(synk): hidden not a multiple of 128 underfills vreg lanes (masked
    # vst stores); a lane-packing wrapper (128//H rows per lane group) would
    # make small-H cases lane-dense.
    out = pl.pallas_call(
        kernel,
        out_shape=jax.ShapeDtypeStruct((rows, hidden), x.dtype),
        grid_spec=pltpu.PrefetchScalarGridSpec(
            num_scalar_prefetch=0,
            grid=grid,
            in_specs=[
                pl.BlockSpec(memory_space=pltpu.MemorySpace.SMEM),  # alpha (1,)
                pl.BlockSpec(memory_space=pltpu.MemorySpace.SMEM),  # beta  (1,)
                pl.BlockSpec((block_rows, hidden), lambda i: (i, 0)),
            ],
            out_specs=pl.BlockSpec((block_rows, hidden), lambda i: (i, 0)),
        ),
        compiler_params=pltpu.CompilerParams(
            dimension_semantics=("parallel",),   # lets v7x's 2 TCs split rows
            vmem_limit_bytes=vmem_limit,
        ),
    )(alpha, beta, x2)

    return out.reshape(orig_shape)


def _reference(x, alpha, beta, epsilon=1e-6):
    x32 = x.astype(jnp.float32)
    mean = jnp.mean(x32, axis=-1, keepdims=True)
    std = jnp.std(x32, axis=-1, keepdims=True, ddof=1)  # unbiased like torch
    return (alpha[0] * (x32 - mean) / jnp.sqrt(std + epsilon) + beta[0]).astype(x.dtype)


if __name__ == "__main__":
    key = jax.random.PRNGKey(0)
    B, S, H = 2, 8, 32
    x = jax.random.normal(key, (B, S, H), dtype=jnp.float32)

    # Parameters initialized deterministically as in nn.Module.__init__.
    alpha = jnp.ones((1,), dtype=jnp.float32)
    beta = jnp.zeros((1,), dtype=jnp.float32)

    out = layer_normilization(x, alpha, beta, epsilon=1e-6)
    out = jax.block_until_ready(out)

    ref = _reference(x, alpha, beta, epsilon=1e-6)
    assert out.shape == x.shape and out.dtype == x.dtype
    assert jnp.allclose(out, ref, atol=1e-5, rtol=1e-5), "mismatch vs reference"

    print("KERNEL_OK")
</pallas_src>

<mosaic_0001>
module attributes {stable_mosaic.version = 11 : i64} {
  func.func @_layernorm_kernel(%arg0: i32, %arg1: memref<1xf32, #tpu.memory_space<smem>>, %arg2: memref<1xf32, #tpu.memory_space<smem>>, %arg3: memref<16x32xf32, #tpu.memory_space<vmem>>, %arg4: memref<16x32xf32, #tpu.memory_space<vmem>>) attributes {dimension_semantics = [#tpu.dimension_semantics<parallel>], iteration_bounds = array<i64: 1>, scalar_prefetch = 0 : i64, scratch_operands = 0 : i64, tpu.core_type = #tpu.core_type<tc>, window_params = [{transform_indices = @transform_0, window_bounds = array<i64: 1>}, {transform_indices = @transform_1, window_bounds = array<i64: 1>}, {transform_indices = @transform_2, window_bounds = array<i64: 16, 32>}, {transform_indices = @transform_3, window_bounds = array<i64: 16, 32>}]} {
    %c0 = arith.constant 0 : index
    %c0_0 = arith.constant 0 : index
    %0 = vector.load %arg3[%c0, %c0_0] : memref<16x32xf32, #tpu.memory_space<vmem>>, vector<16x32xf32>
    %cst = arith.constant dense<0.000000e+00> : vector<16xf32>
    %1 = vector.multi_reduction <add>, %0, %cst [1] : vector<16x32xf32> to vector<16xf32>
    %2 = vector.shape_cast %1 : vector<16xf32> to vector<16x1xf32>
    %3 = arith.mulf %0, %0 : vector<16x32xf32>
    %cst_1 = arith.constant dense<0.000000e+00> : vector<16xf32>
    %4 = vector.multi_reduction <add>, %3, %cst_1 [1] : vector<16x32xf32> to vector<16xf32>
    %5 = vector.shape_cast %4 : vector<16xf32> to vector<16x1xf32>
    %cst_2 = arith.constant 3.200000e+01 : f32
    %6 = vector.broadcast %cst_2 : f32 to vector<16x1xf32>
    %7 = arith.divf %2, %6 : vector<16x1xf32>
    %cst_3 = arith.constant 3.200000e+01 : f32
    %8 = vector.broadcast %cst_3 : f32 to vector<16x1xf32>
    %9 = arith.mulf %8, %7 : vector<16x1xf32>
    %10 = arith.mulf %9, %7 : vector<16x1xf32>
    %11 = arith.subf %5, %10 : vector<16x1xf32>
    %cst_4 = arith.constant 3.100000e+01 : f32
    %12 = vector.broadcast %cst_4 : f32 to vector<16x1xf32>
    %13 = arith.divf %11, %12 : vector<16x1xf32>
    %cst_5 = arith.constant 0.000000e+00 : f32
    %14 = vector.broadcast %cst_5 : f32 to vector<16x1xf32>
    %15 = arith.maximumf %13, %14 : vector<16x1xf32>
    %16 = math.sqrt %15 : vector<16x1xf32>
    %cst_6 = arith.constant 9.99999997E-7 : f32
    %17 = vector.broadcast %cst_6 : f32 to vector<16x1xf32>
    %18 = arith.addf %16, %17 : vector<16x1xf32>
    %19 = math.rsqrt %18 : vector<16x1xf32>
    %c0_7 = arith.constant 0 : index
    %20 = memref.load %arg1[%c0_7] : memref<1xf32, #tpu.memory_space<smem>>
    %21 = vector.broadcast %20 : f32 to vector<16x1xf32>
    %22 = arith.mulf %21, %19 : vector<16x1xf32>
    %c0_8 = arith.constant 0 : index
    %23 = memref.load %arg2[%c0_8] : memref<1xf32, #tpu.memory_space<smem>>
    %24 = arith.mulf %7, %22 : vector<16x1xf32>
    %25 = vector.broadcast %23 : f32 to vector<16x1xf32>
    %26 = arith.subf %25, %24 : vector<16x1xf32>
    %27 = vector.broadcast %22 : vector<16x1xf32> to vector<16x32xf32>
    %28 = arith.mulf %0, %27 : vector<16x32xf32>
    %29 = vector.broadcast %26 : vector<16x1xf32> to vector<16x32xf32>
    %30 = arith.addf %28, %29 : vector<16x32xf32>
    %c0_9 = arith.constant 0 : index
    %c0_10 = arith.constant 0 : index
    %31 = vector.load %arg4[%c0_9, %c0_10] : memref<16x32xf32, #tpu.memory_space<vmem>>, vector<16x32xf32>
    tpu.vector_store %arg4[%c0_9, %c0_10], %30 {strides = array<i32>} : memref<16x32xf32, #tpu.memory_space<vmem>>, vector<16x32xf32>,
    return
  }
  func.func @transform_0(%arg0: i32) -> i32 {
    %c0_i32 = arith.constant 0 : i32
    %c0_i32_0 = arith.constant 0 : i32
    return %c0_i32 : i32
  }
  func.func @transform_1(%arg0: i32) -> i32 {
    %c0_i32 = arith.constant 0 : i32
    %c0_i32_0 = arith.constant 0 : i32
    return %c0_i32 : i32
  }
  func.func @transform_2(%arg0: i32) -> (i32, i32) {
    %c0_i32 = arith.constant 0 : i32
    %c0_i32_0 = arith.constant 0 : i32
    return %arg0, %c0_i32 : i32, i32
  }
  func.func @transform_3(%arg0: i32) -> (i32, i32) {
    %c0_i32 = arith.constant 0 : i32
    %c0_i32_0 = arith.constant 0 : i32
    return %arg0, %c0_i32 : i32, i32
  }
}

</mosaic_0001>

<llo_original>
// kernel: tpu_custom_call.1
$region0: #{tpu_custom_call.1}
  #allocation0 [shape = 'u32[]', space=smem, size = 0x4, offset = 0x4, fixed_abs, tag = 'smem constant byte address 0x4 - core index']
  #allocation1 [shape = 'u32[144,128]{1,0:T(1,128)}', space=vmem, size = 0x12000, scoped, tag = 'internal scratch']
  #allocation2 [shape = 'f32[1]{0:T(128)S(6)}', space=smem, size = 0x200, scoped, tag = 'scoped memory for tpu_custom_call.1']
  #allocation3 [shape = 'f32[1]{0:T(128)S(6)}', space=smem, size = 0x200, scoped, tag = 'scoped memory for tpu_custom_call.1']
  %s0 = inlined_call_operand.<no memory space> [shape: f32[1], index: 0, kind: input, shape index: {}]
  %s1 = inlined_call_operand.<no memory space> [shape: f32[1], index: 1, kind: input, shape index: {}]
  %s2 = inlined_call_operand.hbm [shape: f32[16,32], index: 2, kind: input, shape index: {}]
  %s3 = inlined_call_operand.hbm [shape: f32[16,32], index: 3, kind: output, shape index: {}]
  %s4 = sld [smem:[#allocation0]]
  $region26: #{tpu_custom_call.1} parent=0
    _
  %s6 = ssub.s32 1, %s4
  %s7 = scalar_select 0, %s6, %s4
  %8 = sst [smem:[#allocation2]] %s0
  %9 = sst [smem:[#allocation3]] %s1
  $region1: #{tpu_custom_call.1} parent=0
    #allocation4 [shape = 'u8[8192]{0}', space=vmem, size = 0x2000, scoped, tag = 'input window, operand 2, single buffered']
    #allocation5 [shape = 's32[1]{0}', space=sflag, size = 0x4, scoped, tag = 'scoped memory for tpu_custom_call.1']
    #allocation6 [shape = 's32[1]{0}', space=sflag, size = 0x4, scoped, tag = 'scoped memory for tpu_custom_call.1']
    #allocation7 [shape = 'u8[8192]{0}', space=vmem, size = 0x2000, scoped, tag = 'output window, operand 0, single buffered']
    %10 = vsyncpa [#allocation5], 0
    %11 = vsyncpa [#allocation6], 0
    // Predicated region
    $region2: #{tpu_custom_call.1} parent=1 // pred_check
      _
    $region3: #{tpu_custom_call.1} parent=1 // pred_check_branch
      %13 = sbr.rel (0) target = $region5
    $region4: #{tpu_custom_call.1} parent=1 // pred_region
      _
    $region5: #{tpu_custom_call.1} parent=1 // pred_fallthru
      _
    // Predicated region
    $region6: #{tpu_custom_call.1} parent=1 // pred_check
      _
    $region7: #{tpu_custom_call.1} parent=1 // pred_check_branch
      %15 = sbr.rel (0) target = $region9
    $region8: #{tpu_custom_call.1} parent=1 // pred_region
      _
    $region9: #{tpu_custom_call.1} parent=1 // pred_fallthru
      _
    // Predicated region
    $region10: #{tpu_custom_call.1} parent=1 // pred_check
      _
    $region11: #{tpu_custom_call.1} parent=1 // pred_check_branch
      %17 = sbr.rel (0) target = $region13
    $region12: #{tpu_custom_call.1} parent=1 // pred_region
      %s19 = ssub.s32 256, 256
      %20 = vsyncadd [#allocation5], %s19
      %s21 = sshll.u32 [#allocation4], 4
      %s22 = int_to_ptr.vmem [resolvable:$true] %s21
      %27 = dma.hbm_to_vmem [thread:$0]  %s2, 256, %s22, [#allocation5], 128, 128, 8
    $region13: #{tpu_custom_call.1} parent=1 // pred_fallthru
      _
    // Predicated region
    $region14: #{tpu_custom_call.1} parent=1 // pred_check
      _
    $region15: #{tpu_custom_call.1} parent=1 // pred_check_branch
      %29 = sbr.rel (0) target = $region17
    $region16: #{tpu_custom_call.1} parent=1 // pred_region
      %30 = dma.done [#allocation5], 256
    $region17: #{tpu_custom_call.1} parent=1 // pred_fallthru
      _
    %v31 = vld [vmem:[#allocation4] sm:$0xff]
    %v32 = vld [vmem:[#allocation4 + $0x8] sm:$0xff]
    %vm33 = vcmask 261120
    %v34 = vsel %vm33, %v31, 0.0
    %35 = vadd.xlane.f32.xlu0 %v34
    %v36 = vpop.xlane.xlu0 %35
    %v37 = vsel %vm33, %v32, 0.0
    %38 = vadd.xlane.f32.xlu0 %v37
    %v39 = vpop.xlane.xlu0 %38
    %v40 = vmul.f32 %v31, %v31
    %v41 = vmul.f32 %v32, %v32
    %v42 = vsel %vm33, %v40, 0.0
    %43 = vadd.xlane.f32.xlu0 %v42
    %v44 = vpop.xlane.xlu0 %43
    %v45 = vsel %vm33, %v41, 0.0
    %46 = vadd.xlane.f32.xlu0 %v45
    %v47 = vpop.xlane.xlu0 %46
    %v48 = vrcp.pop 32.0
    %v49 = vmul.f32 %v36, %v48
    %v50 = vmul.f32 %v39, %v48
    %v51 = vmul.f32 %v49, 32.0
    %v52 = vmul.f32 %v50, 32.0
    %v53 = vmul.f32 %v51, %v49
    %v54 = vmul.f32 %v52, %v50
    %v55 = vsub.f32 %v44, %v53
    %v56 = vsub.f32 %v47, %v54
    %v57 = vrcp.pop 31.0
    %v58 = vmul.f32 %v55, %v57
    %v59 = vmul.f32 %v56, %v57
    %v60 = vmax.f32 %v58, 0.0
    %v61 = vmax.f32 %v59, 0.0
    %v62 = vrsqrt.pop %v60
    %v63 = vmul.f32 %v60, %v62
    %vm64 = vcmp.eq.f32.partialorder %v60, inf
    %v65 = vsel %vm64, %v60, %v63
    %vm66 = vcmp.eq.f32.partialorder %v60, 0.0
    %v67 = vand.u32 %v60, 2147483648
    %v68 = vsel %vm66, %v67, %v65
    %v69 = vrsqrt.pop %v61
    %v70 = vmul.f32 %v61, %v69
    %vm71 = vcmp.eq.f32.partialorder %v61, inf
    %v72 = vsel %vm71, %v61, %v70
    %vm73 = vcmp.eq.f32.partialorder %v61, 0.0
    %v74 = vand.u32 %v61, 2147483648
    %v75 = vsel %vm73, %v74, %v72
    %v76 = vadd.f32 %v68, 1e-06
    %v77 = vadd.f32 %v75, 1e-06
    %v78 = vrsqrt.pop %v76
    %v79 = vrsqrt.pop %v77
    %s80 = sld [smem:[#allocation2]]
    %v81 = vstv %s80
    %v82 = vmul.f32 %v81, %v78
    %v83 = vmul.f32 %v81, %v79
    %s84 = sld [smem:[#allocation3]]
    %v85 = vmul.f32 %v49, %v82
    %v86 = vmul.f32 %v50, %v83
    %v87 = vstv %s84
    %v88 = vsub.f32 %v87, %v85
    %v89 = vsub.f32 %v87, %v86
    %v90 = vmul.f32 %v31, %v82
    %v91 = vmul.f32 %v32, %v83
    %v92 = vadd.f32 %v90, %v88
    %v93 = vadd.f32 %v91, %v89
    %94 = vst.msk [vmem:[#allocation7] sm:$0xff] %vm33, %v92
    %95 = vst.msk [vmem:[#allocation7 + $0x8] sm:$0xff] %vm33, %v93
    // Predicated region
    $region18: #{tpu_custom_call.1} parent=1 // pred_check
      _
    $region19: #{tpu_custom_call.1} parent=1 // pred_check_branch
      %97 = sbr.rel (0) target = $region21
    $region20: #{tpu_custom_call.1} parent=1 // pred_region
      %s99 = ssub.s32 256, 256
      %100 = vsyncadd [#allocation6], %s99
      %s101 = sshll.u32 [#allocation7], 4
      %s102 = int_to_ptr.vmem [resolvable:$true] %s101
      %107 = dma.vmem_to_hbm [thread:$0]  %s102, 256, %s3, [#allocation6], 128, 128, 8
    $region21: #{tpu_custom_call.1} parent=1 // pred_fallthru
      _
    // Predicated region
    $region22: #{tpu_custom_call.1} parent=1 // pred_check
      _
    $region23: #{tpu_custom_call.1} parent=1 // pred_check_branch
      %109 = sbr.rel (0) target = $region25
    $region24: #{tpu_custom_call.1} parent=1 // pred_region
      %110 = dma.done [#allocation6], 256
    $region25: #{tpu_custom_call.1} parent=1 // pred_fallthru
      _
    %111 = vsyncpa [#allocation5], 1
    %112 = vsyncpa [#allocation6], 1

</llo_original>
